<compile_context>
chip_gen: v6e
topology: v6e:2x2x1
jax: 0.10.0
libtpu: 0.0.40
codegen_flags: <defaults>
</compile_context>

<pallas_src>
import jax
import jax.numpy as jnp
from jax.experimental import pallas as pl
from jax.experimental.pallas import tpu as pltpu


def _round_up(x, m):
    return (x + m - 1) // m * m


def actor_kernel(ma_ref, s_ref, w1_ref, b1_ref, w2_ref, b2_ref, w3_ref,
                 b3_ref, o_ref):
    # Layer 1: Linear + ReLU  (bf16 MXU operands, f32 accumulation)
    x = s_ref[...].astype(jnp.bfloat16)
    h1 = jnp.dot(x, w1_ref[...], preferred_element_type=jnp.float32)
    h1 = jnp.maximum(h1 + b1_ref[...], 0.0)

    # Layer 2: Linear + ReLU
    h2 = jnp.dot(h1.astype(jnp.bfloat16), w2_ref[...],
                 preferred_element_type=jnp.float32)
    h2 = jnp.maximum(h2 + b2_ref[...], 0.0)

    # Layer 3: Linear + tanh, scaled by max_action (SMEM scalar)
    h3 = jnp.dot(h2.astype(jnp.bfloat16), w3_ref[...],
                 preferred_element_type=jnp.float32) + b3_ref[...]
    o_ref[...] = ma_ref[0, 0] * jnp.tanh(h3)


def prepare_params(params, pad_hidden=False):
    """Pad (action dim always; hidden dims only if requested) and cast weights
    to bf16.  Do once, reuse across calls.

    pad_hidden=False : minimal weight bytes -> best for small-batch latency
                       (grid==1; the weight DMA is the critical path).
    pad_hidden=True  : 400->512 / 300->384 lane-aligned tiles -> best for
                       large, MXU-bound batches.
    """
    w1, b1, w2, b2, w3, b3 = params
    h1 = _round_up(w1.shape[1], 128) if pad_hidden else w1.shape[1]
    h2 = _round_up(w2.shape[1], 128) if pad_hidden else w2.shape[1]
    ap = _round_up(w3.shape[1], 128)   # action dim -> 128 (lane-dense store)

    def pad2(x, rows, cols):
        return jnp.pad(x, ((0, rows - x.shape[0]), (0, cols - x.shape[1])))

    w1p = pad2(w1, w1.shape[0], h1).astype(jnp.bfloat16)
    b1p = pad2(b1, 1, h1)                                   # biases stay f32
    w2p = pad2(w2, h1, h2).astype(jnp.bfloat16)
    b2p = pad2(b2, 1, h2)
    w3p = pad2(w3, h2, ap).astype(jnp.bfloat16)
    b3p = pad2(b3, 1, ap)
    return (w1p, b1p, w2p, b2p, w3p, b3p)


def _choose_batch_tile(B):
    """Review items 1 & 4: big tiles to amortize per-step overhead, but only
    split the batch (>=2 grid steps, duplicated weight DMA per core) when
    there is enough compute to feed both v7x TensorCores."""
    if B < 512:
        return _round_up(B, 8)                      # single grid step
    return min(1024, _round_up(-(-B // 2), 8))      # >=2 steps, TB <= 1024


def actor_forward(state, prepared_params, max_action, action_dim):
    """state: [B, state_dim] f32 -> action: [B, action_dim] f32."""
    w1, b1, w2, b2, w3, b3 = prepared_params
    B, S = state.shape
    H1, H2, AP = w1.shape[1], w2.shape[1], w3.shape[1]

    TB = _choose_batch_tile(B)
    B_pad = _round_up(B, TB)
    if B_pad != B:
        state = jnp.pad(state, ((0, B_pad - B), (0, 0)))
    grid = (B_pad // TB,)

    ma = jnp.full((1, 1), max_action, dtype=jnp.float32)

    flops = 2 * B_pad * (S * H1 + H1 * H2 + H2 * AP)
    bytes_accessed = (
        2 * (w1.size + w2.size + w3.size)        # bf16 weights
        + 4 * (b1.size + b2.size + b3.size)      # f32 biases
        + 4 * (B_pad * S + B_pad * AP))          # state in + action out
    cost = pl.CostEstimate(flops=flops,
                           transcendentals=B_pad * AP,
                           bytes_accessed=bytes_accessed)

    out = pl.pallas_call(
        actor_kernel,
        out_shape=jax.ShapeDtypeStruct((B_pad, AP), jnp.float32),
        grid_spec=pltpu.PrefetchScalarGridSpec(
            num_scalar_prefetch=0,
            grid=grid,
            in_specs=[
                pl.BlockSpec(memory_space=pltpu.MemorySpace.SMEM),  # max_action
                pl.BlockSpec((TB, S), lambda i: (i, 0)),            # state tile
                pl.BlockSpec((S, H1), lambda i: (0, 0)),            # weights stay
                pl.BlockSpec((1, H1), lambda i: (0, 0)),            # resident across
                pl.BlockSpec((H1, H2), lambda i: (0, 0)),           # grid steps
                pl.BlockSpec((1, H2), lambda i: (0, 0)),
                pl.BlockSpec((H2, AP), lambda i: (0, 0)),
                pl.BlockSpec((1, AP), lambda i: (0, 0)),
            ],
            out_specs=pl.BlockSpec((TB, AP), lambda i: (i, 0)),
        ),
        compiler_params=pltpu.CompilerParams(
            dimension_semantics=("parallel",)),
        cost_estimate=cost,
    )(ma, state, w1, b1, w2, b2, w3, b3)

    # Drop the batch padding and the lane padding of the action dim.
    return out[:B, :action_dim]


def init_params(key, state_dim, action_dim):
    """PyTorch nn.Linear default init: U[-1/sqrt(fan_in), +1/sqrt(fan_in)]."""
    def linear(key, fan_in, fan_out):
        kw, kb = jax.random.split(key)
        bound = 1.0 / jnp.sqrt(fan_in)
        w = jax.random.uniform(kw, (fan_in, fan_out), jnp.float32, -bound, bound)
        b = jax.random.uniform(kb, (1, fan_out), jnp.float32, -bound, bound)
        return w, b

    k1, k2, k3 = jax.random.split(key, 3)
    w1, b1 = linear(k1, state_dim, 400)
    w2, b2 = linear(k2, 400, 300)
    w3, b3 = linear(k3, 300, action_dim)
    return (w1, b1, w2, b2, w3, b3)


def actor_ref(state, params, max_action):
    w1, b1, w2, b2, w3, b3 = params
    a = jax.nn.relu(state @ w1 + b1)
    b = jax.nn.relu(a @ w2 + b2)
    return max_action * jnp.tanh(b @ w3 + b3)


if __name__ == "__main__":
    key = jax.random.PRNGKey(0)
    kp, ks1, ks2 = jax.random.split(key, 3)

    state_dim = 16
    action_dim = 4
    max_action = 2.0

    params = init_params(kp, state_dim, action_dim)

    # --- Test 1: small-batch latency regime (grid == 1, no hidden padding) ---
    batch = 2
    prepared_small = prepare_params(params, pad_hidden=False)
    state = jax.random.normal(ks1, (batch, state_dim), jnp.float32)

    out = actor_forward(state, prepared_small, max_action, action_dim)
    out = jax.block_until_ready(out)
    expected = actor_ref(state, params, max_action)
    assert out.shape == (batch, action_dim)
    max_err = jnp.max(jnp.abs(out - expected))
    assert jnp.allclose(out, expected, atol=3e-2, rtol=3e-2), (
        f"small-batch max abs err {max_err}")

    # --- Test 2: large-batch throughput regime (grid >= 2, padded tiles) ---
    batch_big = 600                       # >= 512 -> two grid steps
    prepared_big = prepare_params(params, pad_hidden=True)
    state_big = jax.random.normal(ks2, (batch_big, state_dim), jnp.float32)

    out_big = actor_forward(state_big, prepared_big, max_action, action_dim)
    out_big = jax.block_until_ready(out_big)
    expected_big = actor_ref(state_big, params, max_action)
    assert out_big.shape == (batch_big, action_dim)
    max_err_big = jnp.max(jnp.abs(out_big - expected_big))
    assert jnp.allclose(out_big, expected_big, atol=3e-2, rtol=3e-2), (
        f"large-batch max abs err {max_err_big}")

    print("KERNEL_OK")
</pallas_src>

<mosaic_0001>
module attributes {stable_mosaic.version = 11 : i64} {
  func.func @actor_kernel(%arg0: i32, %arg1: memref<1x1xf32, #tpu.memory_space<smem>>, %arg2: memref<8x16xf32, #tpu.memory_space<vmem>>, %arg3: memref<16x400xbf16, #tpu.memory_space<vmem>>, %arg4: memref<1x400xf32, #tpu.memory_space<vmem>>, %arg5: memref<400x300xbf16, #tpu.memory_space<vmem>>, %arg6: memref<1x300xf32, #tpu.memory_space<vmem>>, %arg7: memref<300x128xbf16, #tpu.memory_space<vmem>>, %arg8: memref<1x128xf32, #tpu.memory_space<vmem>>, %arg9: memref<8x128xf32, #tpu.memory_space<vmem>>) attributes {dimension_semantics = [#tpu.dimension_semantics<parallel>], iteration_bounds = array<i64: 1>, scalar_prefetch = 0 : i64, scratch_operands = 0 : i64, tpu.core_type = #tpu.core_type<tc>, window_params = [{transform_indices = @transform_0, window_bounds = array<i64: 1, 1>}, {transform_indices = @transform_1, window_bounds = array<i64: 8, 16>}, {pipeline_mode = #tpu.pipeline_mode<synchronous>, transform_indices = @transform_2, window_bounds = array<i64: 16, 400>}, {pipeline_mode = #tpu.pipeline_mode<synchronous>, transform_indices = @transform_3, window_bounds = array<i64: 1, 400>}, {pipeline_mode = #tpu.pipeline_mode<synchronous>, transform_indices = @transform_4, window_bounds = array<i64: 400, 300>}, {pipeline_mode = #tpu.pipeline_mode<synchronous>, transform_indices = @transform_5, window_bounds = array<i64: 1, 300>}, {pipeline_mode = #tpu.pipeline_mode<synchronous>, transform_indices = @transform_6, window_bounds = array<i64: 300, 128>}, {pipeline_mode = #tpu.pipeline_mode<synchronous>, transform_indices = @transform_7, window_bounds = array<i64: 1, 128>}, {transform_indices = @transform_8, window_bounds = array<i64: 8, 128>}]} {
    %c0 = arith.constant 0 : index
    %c0_0 = arith.constant 0 : index
    %0 = vector.load %arg2[%c0, %c0_0] : memref<8x16xf32, #tpu.memory_space<vmem>>, vector<8x16xf32>
    %1 = arith.truncf %0 : vector<8x16xf32> to vector<8x16xbf16>
    %c0_1 = arith.constant 0 : index
    %c0_2 = arith.constant 0 : index
    %2 = vector.load %arg3[%c0_1, %c0_2] : memref<16x400xbf16, #tpu.memory_space<vmem>>, vector<16x400xbf16>
    %cst = arith.constant dense<0.000000e+00> : vector<8x400xf32>
    %3 = tpu.matmul %1, %2, %cst {dimension_numbers = #tpu.dot_dimension_numbers<[1], [0], [0], [1], [0, 0, 1, 1], [], []>} : vector<8x16xbf16>, vector<16x400xbf16>, vector<8x400xf32> -> vector<8x400xf32>
    %c0_3 = arith.constant 0 : index
    %c0_4 = arith.constant 0 : index
    %4 = vector.load %arg4[%c0_3, %c0_4] : memref<1x400xf32, #tpu.memory_space<vmem>>, vector<1x400xf32>
    %5 = vector.broadcast %4 : vector<1x400xf32> to vector<8x400xf32>
    %6 = arith.addf %3, %5 : vector<8x400xf32>
    %cst_5 = arith.constant 0.000000e+00 : f32
    %7 = vector.broadcast %cst_5 : f32 to vector<8x400xf32>
    %8 = arith.maximumf %6, %7 : vector<8x400xf32>
    %9 = arith.truncf %8 : vector<8x400xf32> to vector<8x400xbf16>
    %c0_6 = arith.constant 0 : index
    %c0_7 = arith.constant 0 : index
    %10 = vector.load %arg5[%c0_6, %c0_7] : memref<400x300xbf16, #tpu.memory_space<vmem>>, vector<400x300xbf16>
    %cst_8 = arith.constant dense<0.000000e+00> : vector<8x300xf32>
    %11 = tpu.matmul %9, %10, %cst_8 {dimension_numbers = #tpu.dot_dimension_numbers<[1], [0], [0], [1], [0, 0, 1, 1], [], []>} : vector<8x400xbf16>, vector<400x300xbf16>, vector<8x300xf32> -> vector<8x300xf32>
    %c0_9 = arith.constant 0 : index
    %c0_10 = arith.constant 0 : index
    %12 = vector.load %arg6[%c0_9, %c0_10] : memref<1x300xf32, #tpu.memory_space<vmem>>, vector<1x300xf32>
    %13 = vector.broadcast %12 : vector<1x300xf32> to vector<8x300xf32>
    %14 = arith.addf %11, %13 : vector<8x300xf32>
    %cst_11 = arith.constant 0.000000e+00 : f32
    %15 = vector.broadcast %cst_11 : f32 to vector<8x300xf32>
    %16 = arith.maximumf %14, %15 : vector<8x300xf32>
    %17 = arith.truncf %16 : vector<8x300xf32> to vector<8x300xbf16>
    %c0_12 = arith.constant 0 : index
    %c0_13 = arith.constant 0 : index
    %18 = vector.load %arg7[%c0_12, %c0_13] : memref<300x128xbf16, #tpu.memory_space<vmem>>, vector<300x128xbf16>
    %cst_14 = arith.constant dense<0.000000e+00> : vector<8x128xf32>
    %19 = tpu.matmul %17, %18, %cst_14 {dimension_numbers = #tpu.dot_dimension_numbers<[1], [0], [0], [1], [0, 0, 1, 1], [], []>} : vector<8x300xbf16>, vector<300x128xbf16>, vector<8x128xf32> -> vector<8x128xf32>
    %c0_15 = arith.constant 0 : index
    %c0_16 = arith.constant 0 : index
    %20 = vector.load %arg8[%c0_15, %c0_16] : memref<1x128xf32, #tpu.memory_space<vmem>>, vector<1x128xf32>
    %21 = vector.broadcast %20 : vector<1x128xf32> to vector<8x128xf32>
    %22 = arith.addf %19, %21 : vector<8x128xf32>
    %c0_17 = arith.constant 0 : index
    %c0_18 = arith.constant 0 : index
    %23 = memref.load %arg1[%c0_17, %c0_18] : memref<1x1xf32, #tpu.memory_space<smem>>
    %24 = math.tanh %22 : vector<8x128xf32>
    %25 = vector.broadcast %23 : f32 to vector<8x128xf32>
    %26 = arith.mulf %25, %24 : vector<8x128xf32>
    %c0_19 = arith.constant 0 : index
    %c0_20 = arith.constant 0 : index
    %27 = vector.load %arg9[%c0_19, %c0_20] : memref<8x128xf32, #tpu.memory_space<vmem>>, vector<8x128xf32>
    tpu.vector_store %arg9[%c0_19, %c0_20], %26 {strides = array<i32>} : memref<8x128xf32, #tpu.memory_space<vmem>>, vector<8x128xf32>,
    return
  }
  func.func @transform_0(%arg0: i32) -> (i32, i32) {
    %c0_i32 = arith.constant 0 : i32
    %c0_i32_0 = arith.constant 0 : i32
    %c0_i32_1 = arith.constant 0 : i32
    return %c0_i32, %c0_i32_0 : i32, i32
  }
  func.func @transform_1(%arg0: i32) -> (i32, i32) {
    %c0_i32 = arith.constant 0 : i32
    %c0_i32_0 = arith.constant 0 : i32
    return %arg0, %c0_i32 : i32, i32
  }
  func.func @transform_2(%arg0: i32) -> (i32, i32) {
    %c0_i32 = arith.constant 0 : i32
    %c0_i32_0 = arith.constant 0 : i32
    %c0_i32_1 = arith.constant 0 : i32
    return %c0_i32, %c0_i32_0 : i32, i32
  }
  func.func @transform_3(%arg0: i32) -> (i32, i32) {
    %c0_i32 = arith.constant 0 : i32
    %c0_i32_0 = arith.constant 0 : i32
    %c0_i32_1 = arith.constant 0 : i32
    return %c0_i32, %c0_i32_0 : i32, i32
  }
  func.func @transform_4(%arg0: i32) -> (i32, i32) {
    %c0_i32 = arith.constant 0 : i32
    %c0_i32_0 = arith.constant 0 : i32
    %c0_i32_1 = arith.constant 0 : i32
    return %c0_i32, %c0_i32_0 : i32, i32
  }
  func.func @transform_5(%arg0: i32) -> (i32, i32) {
    %c0_i32 = arith.constant 0 : i32
    %c0_i32_0 = arith.constant 0 : i32
    %c0_i32_1 = arith.constant 0 : i32
    return %c0_i32, %c0_i32_0 : i32, i32
  }
  func.func @transform_6(%arg0: i32) -> (i32, i32) {
    %c0_i32 = arith.constant 0 : i32
    %c0_i32_0 = arith.constant 0 : i32
    %c0_i32_1 = arith.constant 0 : i32
    return %c0_i32, %c0_i32_0 : i32, i32
  }
  func.func @transform_7(%arg0: i32) -> (i32, i32) {
    %c0_i32 = arith.constant 0 : i32
    %c0_i32_0 = arith.constant 0 : i32
    %c0_i32_1 = arith.constant 0 : i32
    return %c0_i32, %c0_i32_0 : i32, i32
  }
  func.func @transform_8(%arg0: i32) -> (i32, i32) {
    %c0_i32 = arith.constant 0 : i32
    %c0_i32_0 = arith.constant 0 : i32
    return %arg0, %c0_i32 : i32, i32
  }
}

</mosaic_0001>

<llo_original>
// kernel: tpu_custom_call.1
$region0: #{tpu_custom_call.1}
  #allocation0 [shape = 'u32[]', space=smem, size = 0x4, offset = 0x4, fixed_abs, tag = 'smem constant byte address 0x4 - core index']
  #allocation1 [shape = 'u32[144,128]{1,0:T(1,128)}', space=vmem, size = 0x12000, scoped, tag = 'internal scratch']
  #allocation2 [shape = 'f32[1,1]{1,0:T(1,128)S(6)}', space=smem, size = 0x200, scoped, tag = 'scoped memory for tpu_custom_call.1']
  %s0 = inlined_call_operand.<no memory space> [shape: f32[1,1], index: 0, kind: input, shape index: {}]
  %s1 = inlined_call_operand.hbm [shape: f32[8,16], index: 1, kind: input, shape index: {}]
  %s2 = inlined_call_operand.hbm [shape: bf16[16,400], index: 2, kind: input, shape index: {}]
  %s3 = inlined_call_operand.vmem [shape: f32[1,400], index: 3, kind: input, shape index: {}]
  %s4 = inlined_call_operand.hbm [shape: bf16[400,300], index: 4, kind: input, shape index: {}]
  %s5 = inlined_call_operand.vmem [shape: f32[1,300], index: 5, kind: input, shape index: {}]
  %s6 = inlined_call_operand.hbm [shape: bf16[300,128], index: 6, kind: input, shape index: {}]
  %s7 = inlined_call_operand.vmem [shape: f32[1,128], index: 7, kind: input, shape index: {}]
  %s8 = inlined_call_operand.hbm [shape: f32[8,128], index: 8, kind: output, shape index: {}]
  %s9 = sld [smem:[#allocation0]]
  $region58: #{tpu_custom_call.1} parent=0
    _
  %s11 = ssub.s32 1, %s9
  %s12 = scalar_select 0, %s11, %s9
  %13 = sst [smem:[#allocation2]] %s0
  $region1: #{tpu_custom_call.1} parent=0
    #allocation3 [shape = 'u8[4096]{0}', space=vmem, size = 0x1000, scoped, tag = 'input window, operand 1, single buffered']
    #allocation4 [shape = 's32[1]{0}', space=sflag, size = 0x4, scoped, tag = 'scoped memory for tpu_custom_call.1']
    #allocation5 [shape = 's32[1]{0}', space=sflag, size = 0x4, scoped, tag = 'scoped memory for tpu_custom_call.1']
    #allocation6 [shape = 'u8[16384]{0}', space=vmem, size = 0x4000, scoped, tag = 'input window, operand 2, single buffered']
    #allocation7 [shape = 's32[1]{0}', space=sflag, size = 0x4, scoped, tag = 'scoped memory for tpu_custom_call.1']
    #allocation8 [shape = 'u8[307200]{0}', space=vmem, size = 0x4b000, scoped, tag = 'input window, operand 4, single buffered']
    #allocation9 [shape = 'u8[77824]{0}', space=vmem, size = 0x13000, scoped, tag = 'input window, operand 6, single buffered']
    #allocation10 [shape = 's32[1]{0}', space=sflag, size = 0x4, scoped, tag = 'scoped memory for tpu_custom_call.1']
    #allocation11 [shape = 'u8[4096]{0}', space=vmem, size = 0x1000, scoped, tag = 'output window, operand 0, single buffered']
    %14 = vsyncpa [#allocation4], 0
    %15 = vsyncpa [#allocation7], 0
    %16 = vsyncpa [#allocation10], 0
    %17 = vsyncpa [#allocation5], 0
    // Predicated region
    $region2: #{tpu_custom_call.1} parent=1 // pred_check
      _
    $region3: #{tpu_custom_call.1} parent=1 // pred_check_branch
      %19 = sbr.rel (0) target = $region5
    $region4: #{tpu_custom_call.1} parent=1 // pred_region
      _
    $region5: #{tpu_custom_call.1} parent=1 // pred_fallthru
      _
    // Predicated region
    $region6: #{tpu_custom_call.1} parent=1 // pred_check
      _
    $region7: #{tpu_custom_call.1} parent=1 // pred_check_branch
      %21 = sbr.rel (0) target = $region9
    $region8: #{tpu_custom_call.1} parent=1 // pred_region
      %s23 = ssub.s32 128, 128
      %24 = vsyncadd [#allocation4], %s23
      %s26 = sshll.u32 [#allocation3], 4
      %s27 = int_to_ptr.vmem [resolvable:$true] %s26
      %29 = dma.hbm_to_vmem [thread:$0]  %s1, 128, %s27, [#allocation4]
    $region9: #{tpu_custom_call.1} parent=1 // pred_fallthru
      _
    // Predicated region
    $region10: #{tpu_custom_call.1} parent=1 // pred_check
      _
    $region11: #{tpu_custom_call.1} parent=1 // pred_check_branch
      %31 = sbr.rel (0) target = $region13
    $region12: #{tpu_custom_call.1} parent=1 // pred_region
      %s33 = ssub.s32 512, 512
      %34 = vsyncadd [#allocation7], %s33
      %s35 = sshll.u32 [#allocation6], 4
      %s36 = int_to_ptr.vmem [resolvable:$true] %s35
      %41 = dma.hbm_to_vmem [thread:$0]  %s2, 512, %s36, [#allocation7], 256, 256, 16
    $region13: #{tpu_custom_call.1} parent=1 // pred_fallthru
      _
    // Predicated region
    $region14: #{tpu_custom_call.1} parent=1 // pred_check
      _
    $region15: #{tpu_custom_call.1} parent=1 // pred_check_branch
      %43 = sbr.rel (0) target = $region17
    $region16: #{tpu_custom_call.1} parent=1 // pred_region
      _
    $region17: #{tpu_custom_call.1} parent=1 // pred_fallthru
      _
    // Predicated region
    $region18: #{tpu_custom_call.1} parent=1 // pred_check
      _
    $region19: #{tpu_custom_call.1} parent=1 // pred_check_branch
      %45 = sbr.rel (0) target = $region21
    $region20: #{tpu_custom_call.1} parent=1 // pred_region
      %s47 = ssub.s32 9600, 9600
      %48 = vsyncadd [#allocation7], %s47
      %s49 = sshll.u32 [#allocation8], 4
      %s50 = int_to_ptr.vmem [resolvable:$true] %s49
      %55 = dma.hbm_to_vmem [thread:$0]  %s4, 9600, %s50, [#allocation7], 192, 192, 12
    $region21: #{tpu_custom_call.1} parent=1 // pred_fallthru
      _
    // Predicated region
    $region22: #{tpu_custom_call.1} parent=1 // pred_check
      _
    $region23: #{tpu_custom_call.1} parent=1 // pred_check_branch
      %57 = sbr.rel (0) target = $region25
    $region24: #{tpu_custom_call.1} parent=1 // pred_region
      _
    $region25: #{tpu_custom_call.1} parent=1 // pred_fallthru
      _
    // Predicated region
    $region26: #{tpu_custom_call.1} parent=1 // pred_check
      _
    $region27: #{tpu_custom_call.1} parent=1 // pred_check_branch
      %59 = sbr.rel (0) target = $region29
    $region28: #{tpu_custom_call.1} parent=1 // pred_region
      %s61 = ssub.s32 2432, 2432
      %62 = vsyncadd [#allocation10], %s61
      %s63 = sshll.u32 [#allocation9], 4
      %s64 = int_to_ptr.vmem [resolvable:$true] %s63
      %69 = dma.hbm_to_vmem [thread:$0]  %s6, 2432, %s64, [#allocation10], 64, 64, 4
    $region29: #{tpu_custom_call.1} parent=1 // pred_fallthru
      _
    // Predicated region
    $region30: #{tpu_custom_call.1} parent=1 // pred_check
      _
    $region31: #{tpu_custom_call.1} parent=1 // pred_check_branch
      %71 = sbr.rel (0) target = $region33
    $region32: #{tpu_custom_call.1} parent=1 // pred_region
      _
    $region33: #{tpu_custom_call.1} parent=1 // pred_fallthru
      _
    // Predicated region
    $region34: #{tpu_custom_call.1} parent=1 // pred_check
      _
    $region35: #{tpu_custom_call.1} parent=1 // pred_check_branch
      %73 = sbr.rel (0) target = $region37
    $region36: #{tpu_custom_call.1} parent=1 // pred_region
      %74 = dma.done [#allocation4], 128
    $region37: #{tpu_custom_call.1} parent=1 // pred_fallthru
      _
    // Predicated region
    $region38: #{tpu_custom_call.1} parent=1 // pred_check
      _
    $region39: #{tpu_custom_call.1} parent=1 // pred_check_branch
      %76 = sbr.rel (0) target = $region41
    $region40: #{tpu_custom_call.1} parent=1 // pred_region
      %77 = dma.done [#allocation7], 512
    $region41: #{tpu_custom_call.1} parent=1 // pred_fallthru
      _
    // Predicated region
    $region42: #{tpu_custom_call.1} parent=1 // pred_check
      _
    $region43: #{tpu_custom_call.1} parent=1 // pred_check_branch
      %79 = sbr.rel (0) target = $region45
    $region44: #{tpu_custom_call.1} parent=1 // pred_region
      %80 = dma.done [#allocation7], 9600
    $region45: #{tpu_custom_call.1} parent=1 // pred_fallthru
      _
    // Predicated region
    $region46: #{tpu_custom_call.1} parent=1 // pred_check
      _
    $region47: #{tpu_custom_call.1} parent=1 // pred_check_branch
      %82 = sbr.rel (0) target = $region49
    $region48: #{tpu_custom_call.1} parent=1 // pred_region
      %83 = dma.done [#allocation10], 2432
    $region49: #{tpu_custom_call.1} parent=1 // pred_fallthru
      _
    %v85 = vld [vmem:[#allocation3] sm:$0xff]
    %v86 = vpack.c.bf16 %v85, %v85
    %v87 = vld [vmem:[#allocation6] sm:$0xff]
    %v88 = vld [vmem:[#allocation6 + $0x8] sm:$0xff]
    %v89 = vld [vmem:[#allocation6 + $0x10] sm:$0xff]
    %v90 = vld [vmem:[#allocation6 + $0x18] sm:$0xff]
    %v91 = vld [vmem:[%s3] sm:$0xf]
    %v93 = vlaneseq
    %v94 = vshrl.u32 %v93, 7
    %v95 = vsub.s32 0, %v94
    %v96 = vrot.slane %v91, %v95
    %v97 = vlaneseq
    %v98 = vshrl.u32 %v97, 7
    %v99 = vsub.s32 1, %v98
    %v100 = vrot.slane %v91, %v99
    %v101 = vlaneseq
    %v102 = vshrl.u32 %v101, 7
    %v103 = vsub.s32 2, %v102
    %v104 = vrot.slane %v91, %v103
    %v105 = vlaneseq
    %v106 = vshrl.u32 %v105, 7
    %v107 = vsub.s32 3, %v106
    %v108 = vrot.slane %v91, %v107
    %v117 = vunpack.c.l.b16 %v87
    %v118 = vunpack.c.h.b16 %v87
    %v119 = vunpack.c.l.b16 %v88
    %v120 = vunpack.c.h.b16 %v88
    %v121 = vunpack.c.l.b16 %v89
    %v122 = vunpack.c.h.b16 %v89
    %v123 = vunpack.c.l.b16 %v90
    %v124 = vunpack.c.h.b16 %v90
    %v125 = vpack.c.b16 %v121, %v117
    %v126 = vpack.c.b16 %v122, %v118
    %v127 = vpack.c.b16 %v123, %v119
    %v128 = vpack.c.b16 %v124, %v120
    %vm133 = vcmask 130048
    %v135 = vsel %vm133, %v86, 0
    %137 = vmatprep.subr.bf16.mxu0 0
    %138 = vmatpush1.bf16.msra.mxu0 0
    %139 = vmatprep.subr.bf16.mxu0 0
    %140 = vmatpush1.bf16.msra.mxu0 0
    %141 = vmatprep.subr.bf16.mxu0 0
    %142 = vmatpush1.bf16.msra.mxu0 0
    %143 = vmatprep.subr.bf16.mxu0 0
    %144 = vmatpush1.bf16.msra.mxu0 0
    %145 = vmatprep.subr.bf16.mxu0 0
    %146 = vmatpush1.bf16.msra.mxu0 0
    %147 = vmatprep.subr.bf16.mxu0 0
    %148 = vmatpush1.bf16.msra.mxu0 0
    %149 = vmatprep.subr.bf16.mxu0 0
    %150 = vmatpush1.bf16.msra.mxu0 0
    %151 = vmatprep.subr.bf16.mxu0 %v126
    %152 = vmatpush1.bf16.msra.mxu0 %v125
    %153 = vmatprep.subr.bf16.mxu0 0
    %154 = vmatpush2.bf16.msra.mxu0 0
    %155 = vmatprep.subr.bf16.mxu0 0
    %156 = vmatpush2.bf16.msra.mxu0 0
    %157 = vmatprep.subr.bf16.mxu0 0
    %158 = vmatpush2.bf16.msra.mxu0 0
    %159 = vmatprep.subr.bf16.mxu0 0
    %160 = vmatpush2.bf16.msra.mxu0 0
    %161 = vmatprep.subr.bf16.mxu0 0
    %162 = vmatpush2.bf16.msra.mxu0 0
    %163 = vmatprep.subr.bf16.mxu0 0
    %164 = vmatpush2.bf16.msra.mxu0 0
    %165 = vmatprep.subr.bf16.mxu0 0
    %166 = vmatpush2.bf16.msra.mxu0 0
    %167 = vmatprep.subr.bf16.mxu0 0
    %168 = vmatpush2.bf16.msra.mxu0 0
    %169 = vmatprep.mubr.bf16.mxu0 0
    %170 = vmatmul.mubr.bf16.gmra.mxu0 %v135
    %v171 = vpop.f32.mrf.mxu0
    %v172 = vadd.f32 %v96, %v171
    %v173 = vpop.f32.mrf.mxu0
    %v174 = vadd.f32 %v100, %v173
    %v175 = vpop.f32.mrf.mxu0
    %v176 = vpop.f32.mrf.mxu0
    %177 = vdwg.mxu0
    %178 = vmatprep.subr.bf16.mxu0 0
    %179 = vmatpush1.bf16.msra.mxu0 0
    %180 = vmatprep.subr.bf16.mxu0 0
    %181 = vmatpush1.bf16.msra.mxu0 0
    %182 = vmatprep.subr.bf16.mxu0 0
    %183 = vmatpush1.bf16.msra.mxu0 0
    %184 = vmatprep.subr.bf16.mxu0 0
    %185 = vmatpush1.bf16.msra.mxu0 0
    %186 = vmatprep.subr.bf16.mxu0 0
    %187 = vmatpush1.bf16.msra.mxu0 0
    %188 = vmatprep.subr.bf16.mxu0 0
    %189 = vmatpush1.bf16.msra.mxu0 0
    %190 = vmatprep.subr.bf16.mxu0 0
    %191 = vmatpush1.bf16.msra.mxu0 0
    %192 = vmatprep.subr.bf16.mxu0 %v128
    %193 = vmatpush1.bf16.msra.mxu0 %v127
    %194 = vmatprep.subr.bf16.mxu0 0
    %195 = vmatpush2.bf16.msra.mxu0 0
    %196 = vmatprep.subr.bf16.mxu0 0
    %197 = vmatpush2.bf16.msra.mxu0 0
    %198 = vmatprep.subr.bf16.mxu0 0
    %199 = vmatpush2.bf16.msra.mxu0 0
    %200 = vmatprep.subr.bf16.mxu0 0
    %201 = vmatpush2.bf16.msra.mxu0 0
    %202 = vmatprep.subr.bf16.mxu0 0
    %203 = vmatpush2.bf16.msra.mxu0 0
    %204 = vmatprep.subr.bf16.mxu0 0
    %205 = vmatpush2.bf16.msra.mxu0 0
    %206 = vmatprep.subr.bf16.mxu0 0
    %207 = vmatpush2.bf16.msra.mxu0 0
    %208 = vmatprep.subr.bf16.mxu0 0
    %209 = vmatpush2.bf16.msra.mxu0 0
    %210 = vmatprep.mubr.bf16.mxu0 0
    %211 = vmatmul.mubr.bf16.gmra.mxu0 %v135
    %v212 = vpop.f32.mrf.mxu0
    %v213 = vadd.f32 %v104, %v212
    %v214 = vpop.f32.mrf.mxu0
    %v215 = vadd.f32 %v108, %v214
    %v216 = vpop.f32.mrf.mxu0
    %v217 = vpop.f32.mrf.mxu0
    %218 = vdwg.mxu0
    %v219 = vmax.f32 %v172, 0.0
    %v220 = vmax.f32 %v174, 0.0
    %v221 = vmax.f32 %v213, 0.0
    %v222 = vmax.f32 %v215, 0.0
    %v223 = vpack.c.bf16 %v219, %v219
    %v224 = vpack.c.bf16 %v220, %v220
    %v225 = vpack.c.bf16 %v221, %v221
    %v226 = vpack.c.bf16 %v222, %v222
    %v227 = vld [vmem:[#allocation8] sm:$0xff]
    %v228 = vld [vmem:[#allocation8 + $0x8] sm:$0xf]
    %v229 = vld [vmem:[#allocation8 + $0xc] sm:$0xff]
    %v230 = vld [vmem:[#allocation8 + $0x14] sm:$0xf]
    %v231 = vld [vmem:[#allocation8 + $0x18] sm:$0xff]
    %v232 = vld [vmem:[#allocation8 + $0x20] sm:$0xf]
    %v233 = vld [vmem:[#allocation8 + $0x24] sm:$0xff]
    %v234 = vld [vmem:[#allocation8 + $0x2c] sm:$0xf]
    %v235 = vld [vmem:[#allocation8 + $0x30] sm:$0xff]
    %v236 = vld [vmem:[#allocation8 + $0x38] sm:$0xf]
    %v237 = vld [vmem:[#allocation8 + $0x3c] sm:$0xff]
    %v238 = vld [vmem:[#allocation8 + $0x44] sm:$0xf]
    %v239 = vld [vmem:[#allocation8 + $0x48] sm:$0xff]
    %v240 = vld [vmem:[#allocation8 + $0x50] sm:$0xf]
    %v241 = vld [vmem:[#allocation8 + $0x54] sm:$0xff]
    %v242 = vld [vmem:[#allocation8 + $0x5c] sm:$0xf]
    %v243 = vld [vmem:[#allocation8 + $0x60] sm:$0xff]
    %v244 = vld [vmem:[#allocation8 + $0x68] sm:$0xf]
    %v245 = vld [vmem:[#allocation8 + $0x6c] sm:$0xff]
    %v246 = vld [vmem:[#allocation8 + $0x74] sm:$0xf]
    %v247 = vld [vmem:[#allocation8 + $0x78] sm:$0xff]
    %v248 = vld [vmem:[#allocation8 + $0x80] sm:$0xf]
    %v249 = vld [vmem:[#allocation8 + $0x84] sm:$0xff]
    %v250 = vld [vmem:[#allocation8 + $0x8c] sm:$0xf]
    %v251 = vld [vmem:[#allocation8 + $0x90] sm:$0xff]
    %v252 = vld [vmem:[#allocation8 + $0x98] sm:$0xf]
    %v253 = vld [vmem:[#allocation8 + $0x9c] sm:$0xff]
    %v254 = vld [vmem:[#allocation8 + $0xa4] sm:$0xf]
    %v255 = vld [vmem:[#allocation8 + $0xa8] sm:$0xff]
    %v256 = vld [vmem:[#allocation8 + $0xb0] sm:$0xf]
    %v257 = vld [vmem:[#allocation8 + $0xb4] sm:$0xff]
    %v258 = vld [vmem:[#allocation8 + $0xbc] sm:$0xf]
    %v259 = vld [vmem:[#allocation8 + $0xc0] sm:$0xff]
    %v260 = vld [vmem:[#allocation8 + $0xc8] sm:$0xf]
    %v261 = vld [vmem:[#allocation8 + $0xcc] sm:$0xff]
    %v262 = vld [vmem:[#allocation8 + $0xd4] sm:$0xf]
    %v263 = vld [vmem:[#allocation8 + $0xd8] sm:$0xff]
    %v264 = vld [vmem:[#allocation8 + $0xe0] sm:$0xf]
    %v265 = vld [vmem:[#allocation8 + $0xe4] sm:$0xff]
    %v266 = vld [vmem:[#allocation8 + $0xec] sm:$0xf]
    %v267 = vld [vmem:[#allocation8 + $0xf0] sm:$0xff]
    %v268 = vld [vmem:[#allocation8 + $0xf8] sm:$0xf]
    %v269 = vld [vmem:[#allocation8 + $0xfc] sm:$0xff]
    %v270 = vld [vmem:[#allocation8 + $0x104] sm:$0xf]
    %v271 = vld [vmem:[#allocation8 + $0x108] sm:$0xff]
    %v272 = vld [vmem:[#allocation8 + $0x110] sm:$0xf]
    %v273 = vld [vmem:[#allocation8 + $0x114] sm:$0xff]
    %v274 = vld [vmem:[#allocation8 + $0x11c] sm:$0xf]
    %v275 = vld [vmem:[#allocation8 + $0x120] sm:$0xff]
    %v276 = vld [vmem:[#allocation8 + $0x128] sm:$0xf]
    %v277 = vld [vmem:[#allocation8 + $0x12c] sm:$0xff]
    %v278 = vld [vmem:[#allocation8 + $0x134] sm:$0xf]
    %v279 = vld [vmem:[#allocation8 + $0x138] sm:$0xff]
    %v280 = vld [vmem:[#allocation8 + $0x140] sm:$0xf]
    %v281 = vld [vmem:[#allocation8 + $0x144] sm:$0xff]
    %v282 = vld [vmem:[#allocation8 + $0x14c] sm:$0xf]
    %v283 = vld [vmem:[#allocation8 + $0x150] sm:$0xff]
    %v284 = vld [vmem:[#allocation8 + $0x158] sm:$0xf]
    %v285 = vld [vmem:[#allocation8 + $0x15c] sm:$0xff]
    %v286 = vld [vmem:[#allocation8 + $0x164] sm:$0xf]
    %v287 = vld [vmem:[#allocation8 + $0x168] sm:$0xff]
    %v288 = vld [vmem:[#allocation8 + $0x170] sm:$0xf]
    %v289 = vld [vmem:[#allocation8 + $0x174] sm:$0xff]
    %v290 = vld [vmem:[#allocation8 + $0x17c] sm:$0xf]
    %v291 = vld [vmem:[#allocation8 + $0x180] sm:$0xff]
    %v292 = vld [vmem:[#allocation8 + $0x188] sm:$0xf]
    %v293 = vld [vmem:[#allocation8 + $0x18c] sm:$0xff]
    %v294 = vld [vmem:[#allocation8 + $0x194] sm:$0xf]
    %v295 = vld [vmem:[#allocation8 + $0x198] sm:$0xff]
    %v296 = vld [vmem:[#allocation8 + $0x1a0] sm:$0xf]
    %v297 = vld [vmem:[#allocation8 + $0x1a4] sm:$0xff]
    %v298 = vld [vmem:[#allocation8 + $0x1ac] sm:$0xf]
    %v299 = vld [vmem:[#allocation8 + $0x1b0] sm:$0xff]
    %v300 = vld [vmem:[#allocation8 + $0x1b8] sm:$0xf]
    %v301 = vld [vmem:[#allocation8 + $0x1bc] sm:$0xff]
    %v302 = vld [vmem:[#allocation8 + $0x1c4] sm:$0xf]
    %v303 = vld [vmem:[#allocation8 + $0x1c8] sm:$0xff]
    %v304 = vld [vmem:[#allocation8 + $0x1d0] sm:$0xf]
    %v305 = vld [vmem:[#allocation8 + $0x1d4] sm:$0xff]
    %v306 = vld [vmem:[#allocation8 + $0x1dc] sm:$0xf]
    %v307 = vld [vmem:[#allocation8 + $0x1e0] sm:$0xff]
    %v308 = vld [vmem:[#allocation8 + $0x1e8] sm:$0xf]
    %v309 = vld [vmem:[#allocation8 + $0x1ec] sm:$0xff]
    %v310 = vld [vmem:[#allocation8 + $0x1f4] sm:$0xf]
    %v311 = vld [vmem:[#allocation8 + $0x1f8] sm:$0xff]
    %v312 = vld [vmem:[#allocation8 + $0x200] sm:$0xf]
    %v313 = vld [vmem:[#allocation8 + $0x204] sm:$0xff]
    %v314 = vld [vmem:[#allocation8 + $0x20c] sm:$0xf]
    %v315 = vld [vmem:[#allocation8 + $0x210] sm:$0xff]
    %v316 = vld [vmem:[#allocation8 + $0x218] sm:$0xf]
    %v317 = vld [vmem:[#allocation8 + $0x21c] sm:$0xff]
    %v318 = vld [vmem:[#allocation8 + $0x224] sm:$0xf]
    %v319 = vld [vmem:[#allocation8 + $0x228] sm:$0xff]
    %v320 = vld [vmem:[#allocation8 + $0x230] sm:$0xf]
    %v321 = vld [vmem:[#allocation8 + $0x234] sm:$0xff]
    %v322 = vld [vmem:[#allocation8 + $0x23c] sm:$0xf]
    %v323 = vld [vmem:[#allocation8 + $0x240] sm:$0xff]
    %v324 = vld [vmem:[#allocation8 + $0x248] sm:$0xf]
    %v325 = vld [vmem:[#allocation8 + $0x24c] sm:$0xff]
    %v326 = vld [vmem:[#allocation8 + $0x254] sm:$0xf]
    %v327 = vld [vmem:[%s5] sm:$0x7]
    %v329 = vlaneseq
    %v330 = vshrl.u32 %v329, 7
    %v331 = vsub.s32 0, %v330
    %v332 = vrot.slane %v327, %v331
    %v333 = vlaneseq
    %v334 = vshrl.u32 %v333, 7
    %v335 = vsub.s32 1, %v334
    %v336 = vrot.slane %v327, %v335
    %v337 = vlaneseq
    %v338 = vshrl.u32 %v337, 7
    %v339 = vsub.s32 2, %v338
    %v340 = vrot.slane %v327, %v339
    %v444 = vunpack.c.l.b16 %v227
    %v445 = vunpack.c.h.b16 %v227
    %v446 = vunpack.c.l.b16 %v228
    %v447 = vunpack.c.l.b16 %v229
    %v448 = vunpack.c.h.b16 %v229
    %v449 = vunpack.c.l.b16 %v230
    %v450 = vunpack.c.l.b16 %v231
    %v451 = vunpack.c.h.b16 %v231
    %v452 = vunpack.c.l.b16 %v232
    %v453 = vunpack.c.l.b16 %v233
    %v454 = vunpack.c.h.b16 %v233
    %v455 = vunpack.c.l.b16 %v234
    %v456 = vunpack.c.l.b16 %v235
    %v457 = vunpack.c.h.b16 %v235
    %v458 = vunpack.c.l.b16 %v236
    %v459 = vunpack.c.l.b16 %v237
    %v460 = vunpack.c.h.b16 %v237
    %v461 = vunpack.c.l.b16 %v238
    %v462 = vunpack.c.l.b16 %v239
    %v463 = vunpack.c.h.b16 %v239
    %v464 = vunpack.c.l.b16 %v240
    %v465 = vunpack.c.l.b16 %v241
    %v466 = vunpack.c.h.b16 %v241
    %v467 = vunpack.c.l.b16 %v242
    %v468 = vunpack.c.l.b16 %v243
    %v469 = vunpack.c.h.b16 %v243
    %v470 = vunpack.c.l.b16 %v244
    %v471 = vunpack.c.l.b16 %v245
    %v472 = vunpack.c.h.b16 %v245
    %v473 = vunpack.c.l.b16 %v246
    %v474 = vunpack.c.l.b16 %v247
    %v475 = vunpack.c.h.b16 %v247
    %v476 = vunpack.c.l.b16 %v248
    %v477 = vunpack.c.l.b16 %v249
    %v478 = vunpack.c.h.b16 %v249
    %v479 = vunpack.c.l.b16 %v250
    %v480 = vunpack.c.l.b16 %v251
    %v481 = vunpack.c.h.b16 %v251
    %v482 = vunpack.c.l.b16 %v252
    %v483 = vunpack.c.l.b16 %v253
    %v484 = vunpack.c.h.b16 %v253
    %v485 = vunpack.c.l.b16 %v254
    %v486 = vunpack.c.l.b16 %v255
    %v487 = vunpack.c.h.b16 %v255
    %v488 = vunpack.c.l.b16 %v256
    %v489 = vunpack.c.l.b16 %v257
    %v490 = vunpack.c.h.b16 %v257
    %v491 = vunpack.c.l.b16 %v258
    %v492 = vunpack.c.l.b16 %v259
    %v493 = vunpack.c.h.b16 %v259
    %v494 = vunpack.c.l.b16 %v260
    %v495 = vunpack.c.l.b16 %v261
    %v496 = vunpack.c.h.b16 %v261
    %v497 = vunpack.c.l.b16 %v262
    %v498 = vunpack.c.l.b16 %v263
    %v499 = vunpack.c.h.b16 %v263
    %v500 = vunpack.c.l.b16 %v264
    %v501 = vunpack.c.l.b16 %v265
    %v502 = vunpack.c.h.b16 %v265
    %v503 = vunpack.c.l.b16 %v266
    %v504 = vunpack.c.l.b16 %v267
    %v505 = vunpack.c.h.b16 %v267
    %v506 = vunpack.c.l.b16 %v268
    %v507 = vunpack.c.l.b16 %v269
    %v508 = vunpack.c.h.b16 %v269
    %v509 = vunpack.c.l.b16 %v270
    %v510 = vunpack.c.l.b16 %v271
    %v511 = vunpack.c.h.b16 %v271
    %v512 = vunpack.c.l.b16 %v272
    %v513 = vunpack.c.l.b16 %v273
    %v514 = vunpack.c.h.b16 %v273
    %v515 = vunpack.c.l.b16 %v274
    %v516 = vunpack.c.l.b16 %v275
    %v517 = vunpack.c.h.b16 %v275
    %v518 = vunpack.c.l.b16 %v276
    %v519 = vunpack.c.l.b16 %v277
    %v520 = vunpack.c.h.b16 %v277
    %v521 = vunpack.c.l.b16 %v278
    %v522 = vunpack.c.l.b16 %v279
    %v523 = vunpack.c.h.b16 %v279
    %v524 = vunpack.c.l.b16 %v280
    %v525 = vunpack.c.l.b16 %v281
    %v526 = vunpack.c.h.b16 %v281
    %v527 = vunpack.c.l.b16 %v282
    %v528 = vunpack.c.l.b16 %v283
    %v529 = vunpack.c.h.b16 %v283
    %v530 = vunpack.c.l.b16 %v284
    %v531 = vunpack.c.l.b16 %v285
    %v532 = vunpack.c.h.b16 %v285
    %v533 = vunpack.c.l.b16 %v286
    %v534 = vunpack.c.l.b16 %v287
    %v535 = vunpack.c.h.b16 %v287
    %v536 = vunpack.c.l.b16 %v288
    %v537 = vunpack.c.l.b16 %v289
    %v538 = vunpack.c.h.b16 %v289
    %v539 = vunpack.c.l.b16 %v290
    %v540 = vunpack.c.l.b16 %v291
    %v541 = vunpack.c.h.b16 %v291
    %v542 = vunpack.c.l.b16 %v292
    %v543 = vunpack.c.l.b16 %v293
    %v544 = vunpack.c.h.b16 %v293
    %v545 = vunpack.c.l.b16 %v294
    %v546 = vunpack.c.l.b16 %v295
    %v547 = vunpack.c.h.b16 %v295
    %v548 = vunpack.c.l.b16 %v296
    %v549 = vunpack.c.l.b16 %v297
    %v550 = vunpack.c.h.b16 %v297
    %v551 = vunpack.c.l.b16 %v298
    %v552 = vunpack.c.l.b16 %v299
    %v553 = vunpack.c.h.b16 %v299
    %v554 = vunpack.c.l.b16 %v300
    %v555 = vunpack.c.l.b16 %v301
    %v556 = vunpack.c.h.b16 %v301
    %v557 = vunpack.c.l.b16 %v302
    %v558 = vunpack.c.l.b16 %v303
    %v559 = vunpack.c.h.b16 %v303
    %v560 = vunpack.c.l.b16 %v304
    %v561 = vunpack.c.l.b16 %v305
    %v562 = vunpack.c.h.b16 %v305
    %v563 = vunpack.c.l.b16 %v306
    %v564 = vunpack.c.l.b16 %v307
    %v565 = vunpack.c.h.b16 %v307
    %v566 = vunpack.c.l.b16 %v308
    %v567 = vunpack.c.l.b16 %v309
    %v568 = vunpack.c.h.b16 %v309
    %v569 = vunpack.c.l.b16 %v310
    %v570 = vunpack.c.l.b16 %v311
    %v571 = vunpack.c.h.b16 %v311
    %v572 = vunpack.c.l.b16 %v312
    %v573 = vunpack.c.l.b16 %v313
    %v574 = vunpack.c.h.b16 %v313
    %v575 = vunpack.c.l.b16 %v314
    %v576 = vunpack.c.l.b16 %v315
    %v577 = vunpack.c.h.b16 %v315
    %v578 = vunpack.c.l.b16 %v316
    %v579 = vunpack.c.l.b16 %v317
    %v580 = vunpack.c.h.b16 %v317
    %v581 = vunpack.c.l.b16 %v318
    %v582 = vunpack.c.l.b16 %v319
    %v583 = vunpack.c.h.b16 %v319
    %v584 = vunpack.c.l.b16 %v320
    %v585 = vunpack.c.l.b16 %v321
    %v586 = vunpack.c.h.b16 %v321
    %v587 = vunpack.c.l.b16 %v322
    %v588 = vunpack.c.l.b16 %v323
    %v589 = vunpack.c.h.b16 %v323
    %v590 = vunpack.c.l.b16 %v324
    %v591 = vunpack.c.l.b16 %v325
    %v592 = vunpack.c.h.b16 %v325
    %v593 = vunpack.c.l.b16 %v326
    %v594 = vpack.c.b16 %v447, %v444
    %v595 = vpack.c.b16 %v448, %v445
    %v596 = vpack.c.b16 %v449, %v446
    %v597 = vpack.c.b16 %v453, %v450
    %v598 = vpack.c.b16 %v454, %v451
    %v599 = vpack.c.b16 %v455, %v452
    %v600 = vpack.c.b16 %v459, %v456
    %v601 = vpack.c.b16 %v460, %v457
    %v602 = vpack.c.b16 %v461, %v458
    %v603 = vpack.c.b16 %v465, %v462
    %v604 = vpack.c.b16 %v466, %v463
    %v605 = vpack.c.b16 %v467, %v464
    %v606 = vpack.c.b16 %v471, %v468
    %v607 = vpack.c.b16 %v472, %v469
    %v608 = vpack.c.b16 %v473, %v470
    %v609 = vpack.c.b16 %v477, %v474
    %v610 = vpack.c.b16 %v478, %v475
    %v611 = vpack.c.b16 %v479, %v476
    %v612 = vpack.c.b16 %v483, %v480
    %v613 = vpack.c.b16 %v484, %v481
    %v614 = vpack.c.b16 %v485, %v482
    %v615 = vpack.c.b16 %v489, %v486
    %v616 = vpack.c.b16 %v490, %v487
    %v617 = vpack.c.b16 %v491, %v488
    %v618 = vpack.c.b16 %v495, %v492
    %v619 = vpack.c.b16 %v496, %v493
    %v620 = vpack.c.b16 %v497, %v494
    %v621 = vpack.c.b16 %v501, %v498
    %v622 = vpack.c.b16 %v502, %v499
    %v623 = vpack.c.b16 %v503, %v500
    %v624 = vpack.c.b16 %v507, %v504
    %v625 = vpack.c.b16 %v508, %v505
    %v626 = vpack.c.b16 %v509, %v506
    %v627 = vpack.c.b16 %v513, %v510
    %v628 = vpack.c.b16 %v514, %v511
    %v629 = vpack.c.b16 %v515, %v512
    %v630 = vpack.c.b16 %v519, %v516
    %v631 = vpack.c.b16 %v520, %v517
    %v632 = vpack.c.b16 %v521, %v518
    %v633 = vpack.c.b16 %v525, %v522
    %v634 = vpack.c.b16 %v526, %v523
    %v635 = vpack.c.b16 %v527, %v524
    %v636 = vpack.c.b16 %v531, %v528
    %v637 = vpack.c.b16 %v532, %v529
    %v638 = vpack.c.b16 %v533, %v530
    %v639 = vpack.c.b16 %v537, %v534
    %v640 = vpack.c.b16 %v538, %v535
    %v641 = vpack.c.b16 %v539, %v536
    %v642 = vpack.c.b16 %v543, %v540
    %v643 = vpack.c.b16 %v544, %v541
    %v644 = vpack.c.b16 %v545, %v542
    %v645 = vpack.c.b16 %v549, %v546
    %v646 = vpack.c.b16 %v550, %v547
    %v647 = vpack.c.b16 %v551, %v548
    %v648 = vpack.c.b16 %v555, %v552
    %v649 = vpack.c.b16 %v556, %v553
    %v650 = vpack.c.b16 %v557, %v554
    %v651 = vpack.c.b16 %v561, %v558
    %v652 = vpack.c.b16 %v562, %v559
    %v653 = vpack.c.b16 %v563, %v560
    %v654 = vpack.c.b16 %v567, %v564
    %v655 = vpack.c.b16 %v568, %v565
    %v656 = vpack.c.b16 %v569, %v566
    %v657 = vpack.c.b16 %v573, %v570
    %v658 = vpack.c.b16 %v574, %v571
    %v659 = vpack.c.b16 %v575, %v572
    %v660 = vpack.c.b16 %v579, %v576
    %v661 = vpack.c.b16 %v580, %v577
    %v662 = vpack.c.b16 %v581, %v578
    %v663 = vpack.c.b16 %v585, %v582
    %v664 = vpack.c.b16 %v586, %v583
    %v665 = vpack.c.b16 %v587, %v584
    %v666 = vpack.c.b16 %v591, %v588
    %v667 = vpack.c.b16 %v592, %v589
    %v668 = vpack.c.b16 %v593, %v590
    %v745 = vsel %vm133, %v226, 0
    %747 = vmatprep.subr.bf16.mxu0 %v616
    %748 = vmatpush1.bf16.msra.mxu0 %v615
    %749 = vmatprep.subr.bf16.mxu0 %v613
    %750 = vmatpush1.bf16.msra.mxu0 %v612
    %751 = vmatprep.subr.bf16.mxu0 %v610
    %752 = vmatpush1.bf16.msra.mxu0 %v609
    %753 = vmatprep.subr.bf16.mxu0 %v607
    %754 = vmatpush1.bf16.msra.mxu0 %v606
    %755 = vmatprep.subr.bf16.mxu0 %v604
    %756 = vmatpush1.bf16.msra.mxu0 %v603
    %757 = vmatprep.subr.bf16.mxu0 %v601
    %758 = vmatpush1.bf16.msra.mxu0 %v600
    %759 = vmatprep.subr.bf16.mxu0 %v598
    %760 = vmatpush1.bf16.msra.mxu0 %v597
    %761 = vmatprep.subr.bf16.mxu0 %v595
    %762 = vmatpush1.bf16.msra.mxu0 %v594
    %763 = vmatprep.subr.bf16.mxu0 %v640
    %764 = vmatpush2.bf16.msra.mxu0 %v639
    %765 = vmatprep.subr.bf16.mxu0 %v637
    %766 = vmatpush2.bf16.msra.mxu0 %v636
    %767 = vmatprep.subr.bf16.mxu0 %v634
    %768 = vmatpush2.bf16.msra.mxu0 %v633
    %769 = vmatprep.subr.bf16.mxu0 %v631
    %770 = vmatpush2.bf16.msra.mxu0 %v630
    %771 = vmatprep.subr.bf16.mxu0 %v628
    %772 = vmatpush2.bf16.msra.mxu0 %v627
    %773 = vmatprep.subr.bf16.mxu0 %v625
    %774 = vmatpush2.bf16.msra.mxu0 %v624
    %775 = vmatprep.subr.bf16.mxu0 %v622
    %776 = vmatpush2.bf16.msra.mxu0 %v621
    %777 = vmatprep.subr.bf16.mxu0 %v619
    %778 = vmatpush2.bf16.msra.mxu0 %v618
    %779 = vmatprep.mubr.bf16.mxu0 %v224
    %780 = vmatmul.mubr.bf16.gmra.mxu0 %v223
    %v781 = vpop.f32.mrf.mxu0
    %v782 = vadd.f32 %v332, %v781
    %v783 = vpop.f32.mrf.mxu0
    %v784 = vadd.f32 %v336, %v783
    %v785 = vpop.f32.mrf.mxu0
    %v786 = vpop.f32.mrf.mxu0
    %787 = vdwg.mxu0
    %788 = vmatprep.subr.bf16.mxu0 %v664
    %789 = vmatpush1.bf16.msra.mxu0 %v663
    %790 = vmatprep.subr.bf16.mxu0 %v661
    %791 = vmatpush1.bf16.msra.mxu0 %v660
    %792 = vmatprep.subr.bf16.mxu0 %v658
    %793 = vmatpush1.bf16.msra.mxu0 %v657
    %794 = vmatprep.subr.bf16.mxu0 %v655
    %795 = vmatpush1.bf16.msra.mxu0 %v654
    %796 = vmatprep.subr.bf16.mxu0 %v652
    %797 = vmatpush1.bf16.msra.mxu0 %v651
    %798 = vmatprep.subr.bf16.mxu0 %v649
    %799 = vmatpush1.bf16.msra.mxu0 %v648
    %800 = vmatprep.subr.bf16.mxu0 %v646
    %801 = vmatpush1.bf16.msra.mxu0 %v645
    %802 = vmatprep.subr.bf16.mxu0 %v643
    %803 = vmatpush1.bf16.msra.mxu0 %v642
    %804 = vmatprep.subr.bf16.mxu0 0
    %805 = vmatpush2.bf16.msra.mxu0 0
    %806 = vmatprep.subr.bf16.mxu0 0
    %807 = vmatpush2.bf16.msra.mxu0 0
    %808 = vmatprep.subr.bf16.mxu0 0
    %809 = vmatpush2.bf16.msra.mxu0 0
    %810 = vmatprep.subr.bf16.mxu0 0
    %811 = vmatpush2.bf16.msra.mxu0 0
    %812 = vmatprep.subr.bf16.mxu0 0
    %813 = vmatpush2.bf16.msra.mxu0 0
    %814 = vmatprep.subr.bf16.mxu0 0
    %815 = vmatpush2.bf16.msra.mxu0 0
    %816 = vmatprep.subr.bf16.mxu0 0
    %817 = vmatpush2.bf16.msra.mxu0 0
    %818 = vmatprep.subr.bf16.mxu0 %v667
    %819 = vmatpush2.bf16.msra.mxu0 %v666
    %820 = vmatprep.mubr.bf16.mxu0 %v745
    %821 = vmatmul.mubr.bf16.gmra.mxu0 %v225
    %v822 = vpop.f32.mrf.mxu0
    %v823 = vadd.f32 %v782, %v822
    %v824 = vpop.f32.mrf.mxu0
    %v825 = vadd.f32 %v784, %v824
    %v826 = vpop.f32.mrf.mxu0
    %v827 = vpop.f32.mrf.mxu0
    %828 = vdwg.mxu0
    %829 = vmatprep.subr.bf16.mxu0 0
    %830 = vmatpush1.bf16.msra.mxu0 %v617
    %831 = vmatprep.subr.bf16.mxu0 0
    %832 = vmatpush1.bf16.msra.mxu0 %v614
    %833 = vmatprep.subr.bf16.mxu0 0
    %834 = vmatpush1.bf16.msra.mxu0 %v611
    %835 = vmatprep.subr.bf16.mxu0 0
    %836 = vmatpush1.bf16.msra.mxu0 %v608
    %837 = vmatprep.subr.bf16.mxu0 0
    %838 = vmatpush1.bf16.msra.mxu0 %v605
    %839 = vmatprep.subr.bf16.mxu0 0
    %840 = vmatpush1.bf16.msra.mxu0 %v602
    %841 = vmatprep.subr.bf16.mxu0 0
    %842 = vmatpush1.bf16.msra.mxu0 %v599
    %843 = vmatprep.subr.bf16.mxu0 0
    %844 = vmatpush1.bf16.msra.mxu0 %v596
    %845 = vmatprep.subr.bf16.mxu0 0
    %846 = vmatpush2.bf16.msra.mxu0 %v641
    %847 = vmatprep.subr.bf16.mxu0 0
    %848 = vmatpush2.bf16.msra.mxu0 %v638
    %849 = vmatprep.subr.bf16.mxu0 0
    %850 = vmatpush2.bf16.msra.mxu0 %v635
    %851 = vmatprep.subr.bf16.mxu0 0
    %852 = vmatpush2.bf16.msra.mxu0 %v632
    %853 = vmatprep.subr.bf16.mxu0 0
    %854 = vmatpush2.bf16.msra.mxu0 %v629
    %855 = vmatprep.subr.bf16.mxu0 0
    %856 = vmatpush2.bf16.msra.mxu0 %v626
    %857 = vmatprep.subr.bf16.mxu0 0
    %858 = vmatpush2.bf16.msra.mxu0 %v623
    %859 = vmatprep.subr.bf16.mxu0 0
    %860 = vmatpush2.bf16.msra.mxu0 %v620
    %861 = vmatprep.mubr.bf16.mxu0 %v224
    %862 = vmatmul.mubr.bf16.gmra.mxu0 %v223
    %v863 = vpop.f32.mrf.mxu0
    %v864 = vadd.f32 %v340, %v863
    %v865 = vpop.f32.mrf.mxu0
    %v866 = vpop.f32.mrf.mxu0
    %v867 = vpop.f32.mrf.mxu0
    %868 = vdwg.mxu0
    %869 = vmatprep.subr.bf16.mxu0 0
    %870 = vmatpush1.bf16.msra.mxu0 %v665
    %871 = vmatprep.subr.bf16.mxu0 0
    %872 = vmatpush1.bf16.msra.mxu0 %v662
    %873 = vmatprep.subr.bf16.mxu0 0
    %874 = vmatpush1.bf16.msra.mxu0 %v659
    %875 = vmatprep.subr.bf16.mxu0 0
    %876 = vmatpush1.bf16.msra.mxu0 %v656
    %877 = vmatprep.subr.bf16.mxu0 0
    %878 = vmatpush1.bf16.msra.mxu0 %v653
    %879 = vmatprep.subr.bf16.mxu0 0
    %880 = vmatpush1.bf16.msra.mxu0 %v650
    %881 = vmatprep.subr.bf16.mxu0 0
    %882 = vmatpush1.bf16.msra.mxu0 %v647
    %883 = vmatprep.subr.bf16.mxu0 0
    %884 = vmatpush1.bf16.msra.mxu0 %v644
    %885 = vmatprep.subr.bf16.mxu0 0
    %886 = vmatpush2.bf16.msra.mxu0 0
    %887 = vmatprep.subr.bf16.mxu0 0
    %888 = vmatpush2.bf16.msra.mxu0 0
    %889 = vmatprep.subr.bf16.mxu0 0
    %890 = vmatpush2.bf16.msra.mxu0 0
    %891 = vmatprep.subr.bf16.mxu0 0
    %892 = vmatpush2.bf16.msra.mxu0 0
    %893 = vmatprep.subr.bf16.mxu0 0
    %894 = vmatpush2.bf16.msra.mxu0 0
    %895 = vmatprep.subr.bf16.mxu0 0
    %896 = vmatpush2.bf16.msra.mxu0 0
    %897 = vmatprep.subr.bf16.mxu0 0
    %898 = vmatpush2.bf16.msra.mxu0 0
    %899 = vmatprep.subr.bf16.mxu0 0
    %900 = vmatpush2.bf16.msra.mxu0 %v668
    %901 = vmatprep.mubr.bf16.mxu0 %v745
    %902 = vmatmul.mubr.bf16.gmra.mxu0 %v225
    %v903 = vpop.f32.mrf.mxu0
    %v904 = vadd.f32 %v864, %v903
    %v905 = vpop.f32.mrf.mxu0
    %v906 = vpop.f32.mrf.mxu0
    %v907 = vpop.f32.mrf.mxu0
    %908 = vdwg.mxu0
    %v909 = vmax.f32 %v823, 0.0
    %v910 = vmax.f32 %v825, 0.0
    %v911 = vmax.f32 %v904, 0.0
    %v912 = vpack.c.bf16 %v909, %v909
    %v913 = vpack.c.bf16 %v910, %v910
    %v914 = vpack.c.bf16 %v911, %v911
    %v915 = vld [vmem:[#allocation9] sm:$0xf]
    %v916 = vld [vmem:[#allocation9 + $0x4] sm:$0xf]
    %v917 = vld [vmem:[#allocation9 + $0x8] sm:$0xf]
    %v918 = vld [vmem:[#allocation9 + $0xc] sm:$0xf]
    %v919 = vld [vmem:[#allocation9 + $0x10] sm:$0xf]
    %v920 = vld [vmem:[#allocation9 + $0x14] sm:$0xf]
    %v921 = vld [vmem:[#allocation9 + $0x18] sm:$0xf]
    %v922 = vld [vmem:[#allocation9 + $0x1c] sm:$0xf]
    %v923 = vld [vmem:[#allocation9 + $0x20] sm:$0xf]
    %v924 = vld [vmem:[#allocation9 + $0x24] sm:$0xf]
    %v925 = vld [vmem:[#allocation9 + $0x28] sm:$0xf]
    %v926 = vld [vmem:[#allocation9 + $0x2c] sm:$0xf]
    %v927 = vld [vmem:[#allocation9 + $0x30] sm:$0xf]
    %v928 = vld [vmem:[#allocation9 + $0x34] sm:$0xf]
    %v929 = vld [vmem:[#allocation9 + $0x38] sm:$0xf]
    %v930 = vld [vmem:[#allocation9 + $0x3c] sm:$0xf]
    %v931 = vld [vmem:[#allocation9 + $0x40] sm:$0xf]
    %v932 = vld [vmem:[#allocation9 + $0x44] sm:$0xf]
    %v933 = vld [vmem:[#allocation9 + $0x48] sm:$0xf]
    %v934 = vld [vmem:[#allocation9 + $0x4c] sm:$0xf]
    %v935 = vld [vmem:[#allocation9 + $0x50] sm:$0xf]
    %v936 = vld [vmem:[#allocation9 + $0x54] sm:$0xf]
    %v937 = vld [vmem:[#allocation9 + $0x58] sm:$0xf]
    %v938 = vld [vmem:[#allocation9 + $0x5c] sm:$0xf]
    %v939 = vld [vmem:[#allocation9 + $0x60] sm:$0xf]
    %v940 = vld [vmem:[#allocation9 + $0x64] sm:$0xf]
    %v941 = vld [vmem:[#allocation9 + $0x68] sm:$0xf]
    %v942 = vld [vmem:[#allocation9 + $0x6c] sm:$0xf]
    %v943 = vld [vmem:[#allocation9 + $0x70] sm:$0xf]
    %v944 = vld [vmem:[#allocation9 + $0x74] sm:$0xf]
    %v945 = vld [vmem:[#allocation9 + $0x78] sm:$0xf]
    %v946 = vld [vmem:[#allocation9 + $0x7c] sm:$0xf]
    %v947 = vld [vmem:[#allocation9 + $0x80] sm:$0xf]
    %v948 = vld [vmem:[#allocation9 + $0x84] sm:$0xf]
    %v949 = vld [vmem:[#allocation9 + $0x88] sm:$0xf]
    %v950 = vld [vmem:[#allocation9 + $0x8c] sm:$0xf]
    %v951 = vld [vmem:[#allocation9 + $0x90] sm:$0xf]
    %v952 = vld [vmem:[#allocation9 + $0x94] sm:$0x3]
    %v953 = vld [vmem:[%s7] sm:$0x1]
    %v955 = vlaneseq
    %v956 = vshrl.u32 %v955, 7
    %v957 = vsub.s32 0, %v956
    %v958 = vrot.slane %v953, %v957
    %v998 = vunpack.c.l.b16 %v915
    %v999 = vunpack.c.l.b16 %v916
    %v1000 = vunpack.c.l.b16 %v917
    %v1001 = vunpack.c.l.b16 %v918
    %v1002 = vunpack.c.l.b16 %v919
    %v1003 = vunpack.c.l.b16 %v920
    %v1004 = vunpack.c.l.b16 %v921
    %v1005 = vunpack.c.l.b16 %v922
    %v1006 = vunpack.c.l.b16 %v923
    %v1007 = vunpack.c.l.b16 %v924
    %v1008 = vunpack.c.l.b16 %v925
    %v1009 = vunpack.c.l.b16 %v926
    %v1010 = vunpack.c.l.b16 %v927
    %v1011 = vunpack.c.l.b16 %v928
    %v1012 = vunpack.c.l.b16 %v929
    %v1013 = vunpack.c.l.b16 %v930
    %v1014 = vunpack.c.l.b16 %v931
    %v1015 = vunpack.c.l.b16 %v932
    %v1016 = vunpack.c.l.b16 %v933
    %v1017 = vunpack.c.l.b16 %v934
    %v1018 = vunpack.c.l.b16 %v935
    %v1019 = vunpack.c.l.b16 %v936
    %v1020 = vunpack.c.l.b16 %v937
    %v1021 = vunpack.c.l.b16 %v938
    %v1022 = vunpack.c.l.b16 %v939
    %v1023 = vunpack.c.l.b16 %v940
    %v1024 = vunpack.c.l.b16 %v941
    %v1025 = vunpack.c.l.b16 %v942
    %v1026 = vunpack.c.l.b16 %v943
    %v1027 = vunpack.c.l.b16 %v944
    %v1028 = vunpack.c.l.b16 %v945
    %v1029 = vunpack.c.l.b16 %v946
    %v1030 = vunpack.c.l.b16 %v947
    %v1031 = vunpack.c.l.b16 %v948
    %v1032 = vunpack.c.l.b16 %v949
    %v1033 = vunpack.c.l.b16 %v950
    %v1034 = vunpack.c.l.b16 %v951
    %v1035 = vunpack.c.l.b16 %v952
    %v1036 = vpack.c.b16 %v999, %v998
    %v1037 = vpack.c.b16 %v1001, %v1000
    %v1038 = vpack.c.b16 %v1003, %v1002
    %v1039 = vpack.c.b16 %v1005, %v1004
    %v1040 = vpack.c.b16 %v1007, %v1006
    %v1041 = vpack.c.b16 %v1009, %v1008
    %v1042 = vpack.c.b16 %v1011, %v1010
    %v1043 = vpack.c.b16 %v1013, %v1012
    %v1044 = vpack.c.b16 %v1015, %v1014
    %v1045 = vpack.c.b16 %v1017, %v1016
    %v1046 = vpack.c.b16 %v1019, %v1018
    %v1047 = vpack.c.b16 %v1021, %v1020
    %v1048 = vpack.c.b16 %v1023, %v1022
    %v1049 = vpack.c.b16 %v1025, %v1024
    %v1050 = vpack.c.b16 %v1027, %v1026
    %v1051 = vpack.c.b16 %v1029, %v1028
    %v1052 = vpack.c.b16 %v1031, %v1030
    %v1053 = vpack.c.b16 %v1033, %v1032
    %v1054 = vpack.c.b16 %v1035, %v1034
    %vm1073 = vcmask 359424
    %v1075 = vsel %vm1073, %v914, 0
    %vm1077 = vcmask 1045504
    %v1079 = vsel %vm1077, %v1054, 0
    %1081 = vmatprep.subr.bf16.mxu0 0
    %1082 = vmatpush1.bf16.msra.mxu0 %v1043
    %1083 = vmatprep.subr.bf16.mxu0 0
    %1084 = vmatpush1.bf16.msra.mxu0 %v1042
    %1085 = vmatprep.subr.bf16.mxu0 0
    %1086 = vmatpush1.bf16.msra.mxu0 %v1041
    %1087 = vmatprep.subr.bf16.mxu0 0
    %1088 = vmatpush1.bf16.msra.mxu0 %v1040
    %1089 = vmatprep.subr.bf16.mxu0 0
    %1090 = vmatpush1.bf16.msra.mxu0 %v1039
    %1091 = vmatprep.subr.bf16.mxu0 0
    %1092 = vmatpush1.bf16.msra.mxu0 %v1038
    %1093 = vmatprep.subr.bf16.mxu0 0
    %1094 = vmatpush1.bf16.msra.mxu0 %v1037
    %1095 = vmatprep.subr.bf16.mxu0 0
    %1096 = vmatpush1.bf16.msra.mxu0 %v1036
    %1097 = vmatprep.subr.bf16.mxu0 0
    %1098 = vmatpush2.bf16.msra.mxu0 %v1051
    %1099 = vmatprep.subr.bf16.mxu0 0
    %1100 = vmatpush2.bf16.msra.mxu0 %v1050
    %1101 = vmatprep.subr.bf16.mxu0 0
    %1102 = vmatpush2.bf16.msra.mxu0 %v1049
    %1103 = vmatprep.subr.bf16.mxu0 0
    %1104 = vmatpush2.bf16.msra.mxu0 %v1048
    %1105 = vmatprep.subr.bf16.mxu0 0
    %1106 = vmatpush2.bf16.msra.mxu0 %v1047
    %1107 = vmatprep.subr.bf16.mxu0 0
    %1108 = vmatpush2.bf16.msra.mxu0 %v1046
    %1109 = vmatprep.subr.bf16.mxu0 0
    %1110 = vmatpush2.bf16.msra.mxu0 %v1045
    %1111 = vmatprep.subr.bf16.mxu0 0
    %1112 = vmatpush2.bf16.msra.mxu0 %v1044
    %1113 = vmatprep.mubr.bf16.mxu0 %v913
    %1114 = vmatmul.mubr.bf16.gmra.mxu0 %v912
    %v1115 = vpop.f32.mrf.mxu0
    %v1116 = vadd.f32 %v958, %v1115
    %v1117 = vpop.f32.mrf.mxu0
    %v1118 = vpop.f32.mrf.mxu0
    %v1119 = vpop.f32.mrf.mxu0
    %1120 = vdwg.mxu0
    %1121 = vmatprep.subr.bf16.mxu0 0
    %1122 = vmatpush1.bf16.msra.mxu0 0
    %1123 = vmatprep.subr.bf16.mxu0 0
    %1124 = vmatpush1.bf16.msra.mxu0 0
    %1125 = vmatprep.subr.bf16.mxu0 0
    %1126 = vmatpush1.bf16.msra.mxu0 0
    %1127 = vmatprep.subr.bf16.mxu0 0
    %1128 = vmatpush1.bf16.msra.mxu0 0
    %1129 = vmatprep.subr.bf16.mxu0 0
    %1130 = vmatpush1.bf16.msra.mxu0 0
    %1131 = vmatprep.subr.bf16.mxu0 0
    %1132 = vmatpush1.bf16.msra.mxu0 %v1079
    %1133 = vmatprep.subr.bf16.mxu0 0
    %1134 = vmatpush1.bf16.msra.mxu0 %v1053
    %1135 = vmatprep.subr.bf16.mxu0 0
    %1136 = vmatpush1.bf16.msra.mxu0 %v1052
    %1137 = vmatprep.subr.bf16.mxu0 0
    %1138 = vmatpush2.bf16.msra.mxu0 0
    %1139 = vmatprep.subr.bf16.mxu0 0
    %1140 = vmatpush2.bf16.msra.mxu0 0
    %1141 = vmatprep.subr.bf16.mxu0 0
    %1142 = vmatpush2.bf16.msra.mxu0 0
    %1143 = vmatprep.subr.bf16.mxu0 0
    %1144 = vmatpush2.bf16.msra.mxu0 0
    %1145 = vmatprep.subr.bf16.mxu0 0
    %1146 = vmatpush2.bf16.msra.mxu0 0
    %1147 = vmatprep.subr.bf16.mxu0 0
    %1148 = vmatpush2.bf16.msra.mxu0 0
    %1149 = vmatprep.subr.bf16.mxu0 0
    %1150 = vmatpush2.bf16.msra.mxu0 0
    %1151 = vmatprep.subr.bf16.mxu0 0
    %1152 = vmatpush2.bf16.msra.mxu0 0
    %1153 = vmatprep.mubr.bf16.mxu0 0
    %1154 = vmatmul.mubr.bf16.gmra.mxu0 %v1075
    %v1155 = vpop.f32.mrf.mxu0
    %v1156 = vadd.f32 %v1116, %v1155
    %v1157 = vpop.f32.mrf.mxu0
    %v1158 = vpop.f32.mrf.mxu0
    %v1159 = vpop.f32.mrf.mxu0
    %1160 = vdwg.mxu0
    %s1161 = sld [smem:[#allocation2]]
    %v1162 = vtanh.pop %v1156
    %v1163 = vstv %s1161
    %v1164 = vmul.f32 %v1163, %v1162
    %1165 = vst [vmem:[#allocation11] sm:$0xff] %v1164
    // Predicated region
    $region50: #{tpu_custom_call.1} parent=1 // pred_check
      _
    $region51: #{tpu_custom_call.1} parent=1 // pred_check_branch
      %1167 = sbr.rel (0) target = $region53
    $region52: #{tpu_custom_call.1} parent=1 // pred_region
      %s1169 = ssub.s32 128, 128
      %1170 = vsyncadd [#allocation5], %s1169
      %s1172 = sshll.u32 [#allocation11], 4
      %s1173 = int_to_ptr.vmem [resolvable:$true] %s1172
      %1175 = dma.vmem_to_hbm [thread:$0]  %s1173, 128, %s8, [#allocation5]
    $region53: #{tpu_custom_call.1} parent=1 // pred_fallthru
      _
    // Predicated region
    $region54: #{tpu_custom_call.1} parent=1 // pred_check
      _
    $region55: #{tpu_custom_call.1} parent=1 // pred_check_branch
      %1177 = sbr.rel (0) target = $region57
    $region56: #{tpu_custom_call.1} parent=1 // pred_region
      %1178 = dma.done [#allocation5], 128
    $region57: #{tpu_custom_call.1} parent=1 // pred_fallthru
      _
    %1179 = vsyncpa [#allocation4], 1
    %1180 = vsyncpa [#allocation7], 1
    %1181 = vsyncpa [#allocation10], 1
    %1182 = vsyncpa [#allocation5], 1

</llo_original>
